<compile_context>
chip_gen: v5e
topology: v5e:2x2
jax: 0.10.0
libtpu: 0.0.40
codegen_flags: <defaults>
</compile_context>

<pallas_src>
import math
from functools import partial

import jax
import jax.numpy as jnp
from jax.experimental import pallas as pl
from jax.experimental.pallas import tpu as pltpu


# Scoped VMEM budget: > the 16/32 MiB defaults, still safe on v7x (64 MiB phys).
VMEM_LIMIT = 48 * 1024 * 1024


def _round_up(n, m):
    return ((n + m - 1) // m) * m


def _tile(dim, target, align):
    """Largest tile <= target that divides `dim` and is `align`-aligned;
    falls back to the full dimension (always legal as a block shape)."""
    if dim <= target:
        return dim
    t = (target // align) * align
    while t >= align:
        if dim % t == 0:
            return t
        t -= align
    return dim


# ----------------------------------------------------------------------------
# In-kernel helpers
# ----------------------------------------------------------------------------
def _gelu_exact(x):
    # Exact (erf-based) GELU matching torch.nn.GELU() default.
    # erf via Abramowitz-Stegun 7.1.26 (|err| < 1.5e-7 ~ f32 eps); exp -> EUP.
    z = x * (1.0 / math.sqrt(2.0))
    a = jnp.abs(z)
    t = 1.0 / (1.0 + 0.3275911 * a)
    poly = t * (0.254829592
                + t * (-0.284496736
                       + t * (1.421413741
                              + t * (-1.453152027 + t * 1.061405429))))
    erf_abs = 1.0 - poly * jnp.exp(-a * a)
    erf = jnp.where(z >= 0.0, erf_abs, -erf_abs)
    return 0.5 * x * (1.0 + erf)


def _layer_norm_f32(y, g, b, eps=1e-5):
    mu = jnp.mean(y, axis=-1, keepdims=True)
    var = jnp.mean(jnp.square(y - mu), axis=-1, keepdims=True)
    yn = (y - mu) * jax.lax.rsqrt(var + eps)
    return yn * g + b


# ----------------------------------------------------------------------------
# Tiled linear:  y = x @ w + b   (optional fused GELU)
# ----------------------------------------------------------------------------
def _linear_kernel(x_ref, w_ref, b_ref, o_ref, acc_ref, *, activation):
    @pl.when(pl.program_id(2) == 0)
    def _():
        acc_ref[...] = jnp.zeros_like(acc_ref)

    acc_ref[...] += jnp.dot(x_ref[...], w_ref[...],
                            preferred_element_type=jnp.float32)

    @pl.when(pl.program_id(2) == pl.num_programs(2) - 1)
    def _():
        y = acc_ref[...] + b_ref[...].astype(jnp.float32)
        if activation == "gelu":
            y = _gelu_exact(y)
        o_ref[...] = y.astype(o_ref.dtype)


def pallas_linear(x, w, b, activation=None, out_dtype=None):
    """x:[M,K] bf16, w:[K,N] bf16, b:[N] f32 -> [M,N]."""
    M, K = x.shape
    N = w.shape[1]
    out_dtype = out_dtype or x.dtype
    tm = _tile(M, 512, 16)
    tn = _tile(N, 512, 128)
    tk = _tile(K, 1024, 128)
    kernel = partial(_linear_kernel, activation=activation)
    return pl.pallas_call(
        kernel,
        grid=(M // tm, N // tn, K // tk),
        in_specs=[pl.BlockSpec((tm, tk), lambda i, j, k: (i, k)),
                  pl.BlockSpec((tk, tn), lambda i, j, k: (k, j)),
                  pl.BlockSpec((1, tn), lambda i, j, k: (0, j))],
        out_specs=pl.BlockSpec((tm, tn), lambda i, j, k: (i, j)),
        out_shape=jax.ShapeDtypeStruct((M, N), out_dtype),
        scratch_shapes=[pltpu.VMEM((tm, tn), jnp.float32)],
        compiler_params=pltpu.CompilerParams(
            dimension_semantics=("parallel", "parallel", "arbitrary"),
            vmem_limit_bytes=VMEM_LIMIT),
    )(x, w, b.reshape(1, N))


# ----------------------------------------------------------------------------
# Tiled linear with fused residual-add + LayerNorm epilogue:
#   out = LayerNorm((x @ w + b) + residual) * gamma + beta
# (the per-block scalar `weight` is pre-folded into gamma/beta by the caller)
# N is kept untiled (= full feature dim) so the LN row is complete in one tile.
# ----------------------------------------------------------------------------
def _linear_add_ln_kernel(x_ref, w_ref, b_ref, r_ref, g_ref, bb_ref,
                          o_ref, acc_ref):
    @pl.when(pl.program_id(1) == 0)
    def _():
        acc_ref[...] = jnp.zeros_like(acc_ref)

    acc_ref[...] += jnp.dot(x_ref[...], w_ref[...],
                            preferred_element_type=jnp.float32)

    @pl.when(pl.program_id(1) == pl.num_programs(1) - 1)
    def _():
        y = (acc_ref[...] + b_ref[...].astype(jnp.float32)
             + r_ref[...].astype(jnp.float32))
        out = _layer_norm_f32(y, g_ref[...], bb_ref[...])
        o_ref[...] = out.astype(o_ref.dtype)


def pallas_linear_add_ln(x, w, b, residual, gamma, beta):
    """x:[M,K], w:[K,N], b:[N], residual:[M,N], gamma/beta:[1,N] -> [M,N]."""
    M, K = x.shape
    N = w.shape[1]
    tm = _tile(M, 512, 16)
    tk = _tile(K, 1024, 128)
    return pl.pallas_call(
        _linear_add_ln_kernel,
        grid=(M // tm, K // tk),
        in_specs=[pl.BlockSpec((tm, tk), lambda i, k: (i, k)),
                  pl.BlockSpec((tk, N), lambda i, k: (k, 0)),
                  pl.BlockSpec((1, N), lambda i, k: (0, 0)),
                  pl.BlockSpec((tm, N), lambda i, k: (i, 0)),
                  pl.BlockSpec((1, N), lambda i, k: (0, 0)),
                  pl.BlockSpec((1, N), lambda i, k: (0, 0))],
        out_specs=pl.BlockSpec((tm, N), lambda i, k: (i, 0)),
        out_shape=jax.ShapeDtypeStruct((M, N), residual.dtype),
        scratch_shapes=[pltpu.VMEM((tm, N), jnp.float32)],
        compiler_params=pltpu.CompilerParams(
            dimension_semantics=("parallel", "arbitrary"),
            vmem_limit_bytes=VMEM_LIMIT),
    )(x, w, b.reshape(1, N), residual, gamma, beta)


# ----------------------------------------------------------------------------
# Positional-encoding add: x[B,S,D] + pe[S,D]  (pe broadcast via index_map)
# ----------------------------------------------------------------------------
def _add_pe_kernel(x_ref, pe_ref, o_ref):
    y = x_ref[...].astype(jnp.float32) + pe_ref[...].astype(jnp.float32)
    o_ref[...] = y.astype(o_ref.dtype)


def pallas_add_pe(x, pe):
    B, S, D = x.shape
    ts = _tile(S, 512, 16)
    return pl.pallas_call(
        _add_pe_kernel,
        grid=(B, S // ts),
        in_specs=[pl.BlockSpec((1, ts, D), lambda b, s: (b, s, 0)),
                  pl.BlockSpec((ts, D), lambda b, s: (s, 0))],
        out_specs=pl.BlockSpec((1, ts, D), lambda b, s: (b, s, 0)),
        out_shape=jax.ShapeDtypeStruct(x.shape, x.dtype),
        compiler_params=pltpu.CompilerParams(
            dimension_semantics=("parallel", "parallel"),
            vmem_limit_bytes=VMEM_LIMIT),
    )(x, pe)


# ----------------------------------------------------------------------------
# Final LayerNorm (no residual, no scale)
# ----------------------------------------------------------------------------
def _ln_kernel(x_ref, g_ref, b_ref, o_ref):
    y = x_ref[...].astype(jnp.float32)
    o_ref[...] = _layer_norm_f32(y, g_ref[...], b_ref[...]).astype(o_ref.dtype)


def pallas_ln(x, gamma, beta):
    M, D = x.shape
    tm = _tile(M, 512, 16)
    return pl.pallas_call(
        _ln_kernel,
        grid=(M // tm,),
        in_specs=[pl.BlockSpec((tm, D), lambda i: (i, 0)),
                  pl.BlockSpec((1, D), lambda i: (0, 0)),
                  pl.BlockSpec((1, D), lambda i: (0, 0))],
        out_specs=pl.BlockSpec((tm, D), lambda i: (i, 0)),
        out_shape=jax.ShapeDtypeStruct((M, D), x.dtype),
        compiler_params=pltpu.CompilerParams(
            dimension_semantics=("parallel",),
            vmem_limit_bytes=VMEM_LIMIT),
    )(x, gamma, beta)


# ----------------------------------------------------------------------------
# Flash-style causal attention, reading q/k/v straight out of the fused QKV
# buffer (per-head Dh padded to a 128 multiple -> lane-dense everywhere).
# Grid: (B, H, q_tile, kv_tile).  K/V block index is clamped at the causal
# diagonal so masked-out tiles generate no new DMA.
# ----------------------------------------------------------------------------
def _flash_attn_kernel(q_ref, k_ref, v_ref, o_ref, m_sc, l_sc, acc_sc,
                       *, scale, tq, tkv):
    qi = pl.program_id(2)
    ki = pl.program_id(3)

    @pl.when(ki == 0)
    def _():
        m_sc[...] = jnp.full_like(m_sc, -jnp.inf)
        l_sc[...] = jnp.zeros_like(l_sc)
        acc_sc[...] = jnp.zeros_like(acc_sc)

    q_first = qi * tq
    q_last = (qi + 1) * tq - 1
    k_first = ki * tkv
    k_last = (ki + 1) * tkv - 1

    def scores():
        return jax.lax.dot_general(
            q_ref[0], k_ref[0], (((1,), (1,)), ((), ())),
            preferred_element_type=jnp.float32) * scale

    def update(s):
        m_prev = m_sc[...]
        m_new = jnp.maximum(m_prev, jnp.max(s, axis=-1, keepdims=True))
        alpha = jnp.exp(m_prev - m_new)
        p = jnp.exp(s - m_new)
        l_sc[...] = alpha * l_sc[...] + jnp.sum(p, axis=-1, keepdims=True)
        acc_sc[...] = alpha * acc_sc[...] + jnp.dot(
            p.astype(v_ref.dtype), v_ref[0], preferred_element_type=jnp.float32)
        m_sc[...] = m_new

    # Interior tile (fully below diagonal): no mask work at all.
    @pl.when(k_last <= q_first)
    def _():
        update(scores())

    # Diagonal tile (intersects the causal boundary): masked path.
    @pl.when(jnp.logical_and(k_last > q_first, k_first <= q_last))
    def _():
        s = scores()
        row = q_first + jax.lax.broadcasted_iota(jnp.int32, (tq, tkv), 0)
        col = k_first + jax.lax.broadcasted_iota(jnp.int32, (tq, tkv), 1)
        s = jnp.where(col <= row, s, -1e30)
        update(s)

    # (Tiles fully above the diagonal do nothing; their K/V DMA was also
    #  skipped by the clamped index_map.)

    @pl.when(ki == pl.num_programs(3) - 1)
    def _():
        inv_l = pl.reciprocal(l_sc[...], approx=True)
        o_ref[0] = (acc_sc[...] * inv_l).astype(o_ref.dtype)


def pallas_causal_attention(qkv, num_heads, head_dim, head_dim_padded):
    """qkv: [B, S, 3*H*Dp] (per-head padded layout) -> [B, S, H*Dp]."""
    B, S, W = qkv.shape
    H, Dp = num_heads, head_dim_padded
    assert W == 3 * H * Dp
    tq = _tile(S, 512, 16)
    tkv = _tile(S, 512, 16)
    scale = 1.0 / math.sqrt(head_dim)

    def q_map(b, h, i, j):
        return (b, i, h)

    def k_map(b, h, i, j):
        jj = jnp.minimum(j, ((i + 1) * tq - 1) // tkv)   # no DMA above diagonal
        return (b, jj, H + h)

    def v_map(b, h, i, j):
        jj = jnp.minimum(j, ((i + 1) * tq - 1) // tkv)
        return (b, jj, 2 * H + h)

    def o_map(b, h, i, j):
        return (b, i, h)

    kernel = partial(_flash_attn_kernel, scale=scale, tq=tq, tkv=tkv)
    return pl.pallas_call(
        kernel,
        grid=(B, H, S // tq, S // tkv),
        in_specs=[pl.BlockSpec((1, tq, Dp), q_map),
                  pl.BlockSpec((1, tkv, Dp), k_map),
                  pl.BlockSpec((1, tkv, Dp), v_map)],
        out_specs=pl.BlockSpec((1, tq, Dp), o_map),
        out_shape=jax.ShapeDtypeStruct((B, S, H * Dp), qkv.dtype),
        scratch_shapes=[pltpu.VMEM((tq, 1), jnp.float32),
                        pltpu.VMEM((tq, 1), jnp.float32),
                        pltpu.VMEM((tq, Dp), jnp.float32)],
        compiler_params=pltpu.CompilerParams(
            dimension_semantics=("parallel", "parallel", "parallel", "arbitrary"),
            vmem_limit_bytes=VMEM_LIMIT),
    )(qkv, qkv, qkv)


# ----------------------------------------------------------------------------
# Parameter setup (plain JAX glue); per-head / ff / vocab dims zero-padded to
# 128 multiples so every Pallas block stays lane-dense.
# ----------------------------------------------------------------------------
def sinusoidal_pe(max_len, d):
    pos = jnp.arange(max_len, dtype=jnp.float32)[:, None]
    div = jnp.exp(jnp.arange(0, d, 2, dtype=jnp.float32) * (-math.log(10000.0) / d))
    pe = jnp.zeros((max_len, d), jnp.float32)
    pe = pe.at[:, 0::2].set(jnp.sin(pos * div))
    pe = pe.at[:, 1::2].set(jnp.cos(pos * div))
    return pe


def init_params(key, embed_dim, num_heads, ff_dim, num_layers, vocab_size,
                max_seq_len, act_dtype=jnp.bfloat16):
    assert embed_dim % num_heads == 0
    Dh = embed_dim // num_heads
    Dp = _round_up(Dh, 128)
    ffp = _round_up(ff_dim, 128)
    vocabp = _round_up(vocab_size, 128)

    def lin(k, fan_in, fan_out):
        w = jax.random.normal(k, (fan_in, fan_out), jnp.float32) * 0.02
        return w.astype(act_dtype)

    def pad_head_cols(w):            # [D, H*Dh] -> [D, H*Dp], zero per-head pad
        w = w.reshape(embed_dim, num_heads, Dh)
        w = jnp.pad(w, ((0, 0), (0, 0), (0, Dp - Dh)))
        return w.reshape(embed_dim, num_heads * Dp)

    def pad_head_rows(w):            # [H*Dh, D] -> [H*Dp, D]
        w = w.reshape(num_heads, Dh, embed_dim)
        w = jnp.pad(w, ((0, 0), (0, Dp - Dh), (0, 0)))
        return w.reshape(num_heads * Dp, embed_dim)

    keys = jax.random.split(key, num_layers + 1)
    layers = []
    for l in range(num_layers):
        kl = jax.random.split(keys[l], 6)
        wq = pad_head_cols(lin(kl[0], embed_dim, embed_dim))
        wk = pad_head_cols(lin(kl[1], embed_dim, embed_dim))
        wv = pad_head_cols(lin(kl[2], embed_dim, embed_dim))
        layers.append(dict(
            wqkv=jnp.concatenate([wq, wk, wv], axis=1),      # [D, 3*H*Dp]
            bqkv=jnp.zeros((3 * num_heads * Dp,), jnp.float32),
            wo=pad_head_rows(lin(kl[3], embed_dim, embed_dim)),  # [H*Dp, D]
            bo=jnp.zeros((embed_dim,), jnp.float32),
            ln1_g=jnp.ones((1, embed_dim), jnp.float32),
            ln1_b=jnp.zeros((1, embed_dim), jnp.float32),
            block_w=jnp.ones((1, 1), jnp.float32),            # nn.Parameter(ones(1))
            w1=jnp.pad(lin(kl[4], embed_dim, ff_dim), ((0, 0), (0, ffp - ff_dim))),
            b1=jnp.zeros((ffp,), jnp.float32),
            w2=jnp.pad(lin(kl[5], ff_dim, embed_dim), ((0, ffp - ff_dim), (0, 0))),
            b2=jnp.zeros((embed_dim,), jnp.float32),
            ln2_g=jnp.ones((1, embed_dim), jnp.float32),
            ln2_b=jnp.zeros((1, embed_dim), jnp.float32),
        ))
    return dict(
        pe=sinusoidal_pe(max_seq_len, embed_dim),
        layers=layers,
        lnf_g=jnp.ones((1, embed_dim), jnp.float32),
        lnf_b=jnp.zeros((1, embed_dim), jnp.float32),
        wdec=jnp.pad(lin(keys[num_layers], embed_dim, vocab_size),
                     ((0, 0), (0, vocabp - vocab_size))),      # [D, Vp]
        bdec=jnp.zeros((vocabp,), jnp.float32),
        num_heads=num_heads,
        head_dim=Dh,
        head_dim_padded=Dp,
        vocab_size=vocab_size,
        act_dtype=act_dtype,
    )


# ----------------------------------------------------------------------------
# GPT forward (mirrors the PyTorch module; Dropout == identity at inference)
# ----------------------------------------------------------------------------
def gpt_forward(params, x, use_cache=False):
    # TODO(synk): use_cache flag has no effect; cached k/v are always returned
    # (matches reference output signature; no decode-step cache reuse).
    B, S, D = x.shape
    H = params["num_heads"]
    Dh = params["head_dim"]
    Dp = params["head_dim_padded"]
    x = x.astype(params["act_dtype"])

    # positional encoding added in-kernel, pe broadcast over batch via index_map
    x2 = pallas_add_pe(x, params["pe"][:S]).reshape(B * S, D)

    cached_keys, cached_values = [], []
    for lp in params["layers"]:
        # --- fused QKV projection (x read once; per-head padded layout) ---
        qkv = pallas_linear(x2, lp["wqkv"], lp["bqkv"])       # [B*S, 3*H*Dp]
        qkv3 = qkv.reshape(B, S, 3 * H * Dp)

        # --- flash causal MHA straight from the QKV slab (no HBM transposes) ---
        attn = pallas_causal_attention(qkv3, H, Dh, Dp)       # [B, S, H*Dp]
        attn2 = attn.reshape(B * S, H * Dp)

        # x = LayerNorm1(Wo(attn) + x) * weight  (residual + LN + scale fused
        # into the Wo matmul epilogue; scale folded into gamma/beta)
        g1 = lp["ln1_g"] * lp["block_w"]
        b1 = lp["ln1_b"] * lp["block_w"]
        x2 = pallas_linear_add_ln(attn2, lp["wo"], lp["bo"], x2, g1, b1)

        # FFN: Linear -> GELU (fused) -> Linear + residual + LayerNorm2 (fused)
        h = pallas_linear(x2, lp["w1"], lp["b1"], activation="gelu")
        x2 = pallas_linear_add_ln(h, lp["w2"], lp["b2"], x2,
                                  lp["ln2_g"], lp["ln2_b"])

        # k/v caches: slice off the head padding, return as [B, H, S, Dh]
        kv = qkv3.reshape(B, S, 3, H, Dp)
        cached_keys.append(jnp.transpose(kv[:, :, 1, :, :Dh], (0, 2, 1, 3)))
        cached_values.append(jnp.transpose(kv[:, :, 2, :, :Dh], (0, 2, 1, 3)))

    # final norm (no residual) + decoder projection (padded vocab, then slice)
    x2 = pallas_ln(x2, params["lnf_g"], params["lnf_b"])
    logits = pallas_linear(x2, params["wdec"], params["bdec"],
                           out_dtype=jnp.float32)
    logits = logits.reshape(B, S, -1)[..., :params["vocab_size"]]
    return logits, cached_keys, cached_values


# ----------------------------------------------------------------------------
# Demo
# ----------------------------------------------------------------------------
if __name__ == "__main__":
    key = jax.random.PRNGKey(0)
    pk, xk = jax.random.split(key)

    # Small, shape-consistent configuration (reference: 1000/10/4000/25/1001).
    B, S = 2, 8
    embed_dim, num_heads, ff_dim, num_layers, vocab_size = 32, 4, 64, 2, 33
    max_seq_len = 64

    params = init_params(pk, embed_dim, num_heads, ff_dim, num_layers,
                         vocab_size, max_seq_len)
    x = jax.random.normal(xk, (B, S, embed_dim), jnp.float32)

    logits, cached_k, cached_v = gpt_forward(params, x, use_cache=False)
    jax.block_until_ready(logits)
    for kk, vv in zip(cached_k, cached_v):
        jax.block_until_ready(kk)
        jax.block_until_ready(vv)

    assert logits.shape == (B, S, vocab_size)
    assert len(cached_k) == num_layers and len(cached_v) == num_layers
    assert cached_k[0].shape == (B, num_heads, S, embed_dim // num_heads)
    print("KERNEL_OK")
</pallas_src>

<mosaic_0001>
module attributes {stable_mosaic.version = 11 : i64} {
  func.func @_add_pe_kernel(%arg0: i32, %arg1: i32, %arg2: memref<1x8x32xbf16, #tpu.memory_space<vmem>>, %arg3: memref<8x32xf32, #tpu.memory_space<vmem>>, %arg4: memref<1x8x32xbf16, #tpu.memory_space<vmem>>) attributes {dimension_semantics = [#tpu.dimension_semantics<parallel>, #tpu.dimension_semantics<parallel>], iteration_bounds = array<i64: 2, 1>, scalar_prefetch = 0 : i64, scratch_operands = 0 : i64, tpu.core_type = #tpu.core_type<tc>, window_params = [{transform_indices = @transform_0, window_bounds = array<i64: 1, 8, 32>}, {transform_indices = @transform_1, window_bounds = array<i64: 8, 32>}, {transform_indices = @transform_2, window_bounds = array<i64: 1, 8, 32>}]} {
    %c0 = arith.constant 0 : index
    %c0_0 = arith.constant 0 : index
    %c0_1 = arith.constant 0 : index
    %0 = vector.load %arg2[%c0, %c0_0, %c0_1] : memref<1x8x32xbf16, #tpu.memory_space<vmem>>, vector<1x8x32xbf16>
    %1 = arith.extf %0 : vector<1x8x32xbf16> to vector<1x8x32xf32>
    %c0_2 = arith.constant 0 : index
    %c0_3 = arith.constant 0 : index
    %2 = vector.load %arg3[%c0_2, %c0_3] : memref<8x32xf32, #tpu.memory_space<vmem>>, vector<8x32xf32>
    %3 = vector.shape_cast %2 : vector<8x32xf32> to vector<1x8x32xf32>
    %4 = arith.addf %1, %3 : vector<1x8x32xf32>
    %5 = arith.truncf %4 : vector<1x8x32xf32> to vector<1x8x32xbf16>
    %c0_4 = arith.constant 0 : index
    %c0_5 = arith.constant 0 : index
    %c0_6 = arith.constant 0 : index
    %6 = vector.load %arg4[%c0_4, %c0_5, %c0_6] : memref<1x8x32xbf16, #tpu.memory_space<vmem>>, vector<1x8x32xbf16>
    tpu.vector_store %arg4[%c0_4, %c0_5, %c0_6], %5 {strides = array<i32>} : memref<1x8x32xbf16, #tpu.memory_space<vmem>>, vector<1x8x32xbf16>,
    return
  }
  func.func @transform_0(%arg0: i32, %arg1: i32) -> (i32, i32, i32) {
    %c0_i32 = arith.constant 0 : i32
    %c0_i32_0 = arith.constant 0 : i32
    return %arg0, %arg1, %c0_i32 : i32, i32, i32
  }
  func.func @transform_1(%arg0: i32, %arg1: i32) -> (i32, i32) {
    %c0_i32 = arith.constant 0 : i32
    %c0_i32_0 = arith.constant 0 : i32
    return %arg1, %c0_i32 : i32, i32
  }
  func.func @transform_2(%arg0: i32, %arg1: i32) -> (i32, i32, i32) {
    %c0_i32 = arith.constant 0 : i32
    %c0_i32_0 = arith.constant 0 : i32
    return %arg0, %arg1, %c0_i32 : i32, i32, i32
  }
}

</mosaic_0001>

<llo_original>
// kernel: tpu_custom_call.1
$region0: #{tpu_custom_call.1}
  #allocation0 [shape = 'u32[]', space=smem, size = 0x4, offset = 0x4, fixed_abs, tag = 'smem constant byte address 0x4 - core index']
  #allocation1 [shape = 'u32[72,128]{1,0:T(1,128)}', space=vmem, size = 0x9000, scoped, tag = 'internal scratch']
  %s0 = inlined_call_operand.hbm [shape: bf16[2,8,32], index: 0, kind: input, shape index: {}]
  %s1 = inlined_call_operand.hbm [shape: f32[8,32], index: 1, kind: input, shape index: {}]
  %s2 = inlined_call_operand.hbm [shape: bf16[2,8,32], index: 2, kind: output, shape index: {}]
  %s3 = sld [smem:[#allocation0]]
  $region49: #{tpu_custom_call.1} parent=0
    _
  %s5 = ssub.s32 1, %s3
  %s6 = scalar_select 0, %s5, %s3
  $region1: #{tpu_custom_call.1} parent=0
    #allocation2 [shape = 'u8[4096]{0}', space=vmem, size = 0x1000, scoped, tag = 'input window, operand 0']
    #allocation3 [shape = 's32[2]{0}', space=sflag, size = 0x8, scoped, tag = 'scoped memory for tpu_custom_call.1']
    #allocation4 [shape = 's32[2]{0}', space=sflag, size = 0x8, scoped, tag = 'scoped memory for tpu_custom_call.1']
    #allocation5 [shape = 'u8[4096]{0}', space=vmem, size = 0x1000, scoped, tag = 'input window, operand 1, single buffered']
    #allocation6 [shape = 's32[1]{0}', space=sflag, size = 0x4, scoped, tag = 'scoped memory for tpu_custom_call.1']
    #allocation7 [shape = 'u8[4096]{0}', space=vmem, size = 0x1000, scoped, tag = 'output window, operand 0']
    %7 = vsyncpa [#allocation3], 0
    %s8 = scalar_lea.sflag [#allocation3], 1
    %9 = vsyncpa %s8, 0
    %10 = vsyncpa [#allocation6], 0
    %11 = vsyncpa [#allocation4], 0
    %s12 = scalar_lea.sflag [#allocation4], 1
    %13 = vsyncpa %s12, 0
    loop: start=0, step=1, limit=4
    $region2: #{tpu_custom_call.1} parent=1 // loop_pre_header
      _
    $region3: #{tpu_custom_call.1} parent=1 // loop_header
      %s15 = sphi 0, %s19
      %p16 = scmp.ge.s32.totalorder %s15, 4
      %s22 = sphi 0, %s34
      %s23 = sphi 0, %s30
      %s24 = sphi 0, %s22
      %s25 = sphi 0, %s23
      %s26 = sphi 0, %s24
      %s27 = sphi 0, %s25
      %s39 = sphi 0, %s41
      %s42 = sphi 0, %s39
      %s43 = sphi 0, %s42
      %s59 = sphi 0, %s43
      %s65 = sphi 0, %s67
      %s68 = sphi 0, %s65
      %s69 = sphi 0, %s68
      %s85 = sphi 0, %s69
      %s93 = sphi 0, %s95
      %s96 = sphi 0, %s93
      %s97 = sphi 0, %s96
      %s113 = sphi 0, %s97
    $region4: #{tpu_custom_call.1} parent=1 // loop_header_branch
      %18 = sbr.rel (%p16) target = $region8
    $region5: #{tpu_custom_call.1} parent=1 // loop_body
      %s20 = ssub.s32 %s15, 1
      %s21 = ssub.s32 %s15, 2
      %s28 = sadd.s32 1, %s23
      %p29 = scmp.ge.s32.totalorder %s28, 1
      %s30 = scalar_select %p29, 0, %s28
      %s31 = sadd.s32 1, %s22
      %s32 = scalar_select %p29, %s31, %s22
      %p33 = scmp.ge.s32.totalorder %s32, 2
      %s34 = scalar_select %p33, 0, %s32
      %s35 = ssub.s32 %s22, %s34
      %s36 = ssub.s32 %s23, %s30
      %s37 = sor.u32 %s35, %s36
      %p38 = scmp.eq.s32.totalorder %s37, 0
      %s40 = sadd.s32 %s39, 1
      %s41 = scalar_select %p38, %s39, %s40
      %p44 = pneg %p38
      %p45 = scmp.eq.s32.totalorder %s15, 1
      %p46 = por %p44, %p45
      %p47 = scmp.ne.s32.totalorder %s39, %s42
      %p48 = scmp.eq.s32.totalorder %s15, 0
      %p49 = por %p47, %p48
      %p50 = scmp.ne.s32.totalorder %s39, %s42
      %p51 = scmp.eq.s32.totalorder %s20, 1
      %p52 = por %p50, %p51
      %p53 = scmp.ne.s32.totalorder %s42, %s43
      %p54 = scmp.eq.s32.totalorder %s20, 0
      %p55 = por %p53, %p54
      %p56 = scmp.ne.s32.totalorder %s42, %s43
      %p57 = scmp.eq.s32.totalorder %s21, 1
      %p58 = por %p56, %p57
      %p60 = scmp.ne.s32.totalorder %s43, %s59
      %p61 = scmp.eq.s32.totalorder %s21, 0
      %p62 = por %p60, %p61
      %s63 = ssub.s32 %s23, %s30
      %p64 = scmp.eq.s32.totalorder %s63, 0
      %s66 = sadd.s32 %s65, 1
      %s67 = scalar_select %p64, %s65, %s66
      %p70 = pneg %p64
      %p71 = scmp.eq.s32.totalorder %s15, 1
      %p72 = por %p70, %p71
      %p73 = scmp.ne.s32.totalorder %s65, %s68
      %p74 = scmp.eq.s32.totalorder %s15, 0
      %p75 = por %p73, %p74
      %p76 = scmp.ne.s32.totalorder %s65, %s68
      %p77 = scmp.eq.s32.totalorder %s20, 1
      %p78 = por %p76, %p77
      %p79 = scmp.ne.s32.totalorder %s68, %s69
      %p80 = scmp.eq.s32.totalorder %s20, 0
      %p81 = por %p79, %p80
      %p82 = scmp.ne.s32.totalorder %s68, %s69
      %p83 = scmp.eq.s32.totalorder %s21, 1
      %p84 = por %p82, %p83
      %p86 = scmp.ne.s32.totalorder %s69, %s85
      %p87 = scmp.eq.s32.totalorder %s21, 0
      %p88 = por %p86, %p87
      %s89 = ssub.s32 %s22, %s34
      %s90 = ssub.s32 %s23, %s30
      %s91 = sor.u32 %s89, %s90
      %p92 = scmp.eq.s32.totalorder %s91, 0
      %s94 = sadd.s32 %s93, 1
      %s95 = scalar_select %p92, %s93, %s94
      %p98 = pneg %p92
      %p99 = scmp.eq.s32.totalorder %s15, 1
      %p100 = por %p98, %p99
      %p101 = scmp.ne.s32.totalorder %s93, %s96
      %p102 = scmp.eq.s32.totalorder %s15, 0
      %p103 = por %p101, %p102
      %p104 = scmp.ne.s32.totalorder %s93, %s96
      %p105 = scmp.eq.s32.totalorder %s20, 1
      %p106 = por %p104, %p105
      %p107 = scmp.ne.s32.totalorder %s96, %s97
      %p108 = scmp.eq.s32.totalorder %s20, 0
      %p109 = por %p107, %p108
      %p110 = scmp.ne.s32.totalorder %s96, %s97
      %p111 = scmp.eq.s32.totalorder %s21, 1
      %p112 = por %p110, %p111
      %p114 = scmp.ne.s32.totalorder %s97, %s113
      %p115 = scmp.eq.s32.totalorder %s21, 0
      %p116 = por %p114, %p115
      %p117 = scmp.le.s32.totalorder 1, %s15
      %p118 = scmp.lt.s32.totalorder %s15, 3
      %p119 = pnand %p117, %p118
      %p120 = pneg %p119
      // Predicated region
      $region9: #{tpu_custom_call.1} parent=5 // pred_check
        _
      $region10: #{tpu_custom_call.1} parent=5 // pred_check_branch
        %122 = sbr.rel (%p119) target = $region12
      $region11: #{tpu_custom_call.1} parent=5 // pred_region
        %s123 = ssub.s32 %s15, 1
        // Predicated region
        $region13: #{tpu_custom_call.1} parent=11 // pred_check
          %p124 = pneg %p81
        $region14: #{tpu_custom_call.1} parent=11 // pred_check_branch
          %126 = sbr.rel (%p124) target = $region16
        $region15: #{tpu_custom_call.1} parent=11 // pred_region
          %128 = vsyncadd [#allocation6], 0
          %s129 = smul.addr %s25, 8
          %s130 = scalar_lea.hbm %s1, %s129
          %s132 = sshll.u32 %s130, 4
          %s133 = int_to_ptr.hbm [resolvable:$true] %s132
          %s134 = sshll.u32 [#allocation5], 4
          %s135 = int_to_ptr.vmem [resolvable:$true] %s134
          %137 = dma.hbm_to_vmem [thread:$0]  %s133, 128, %s135, [#allocation6]
        $region16: #{tpu_custom_call.1} parent=11 // pred_fallthru
          _
      $region12: #{tpu_custom_call.1} parent=5 // pred_fallthru
        _
      %p138 = scmp.lt.s32.totalorder %s15, 2
      // Predicated region
      $region17: #{tpu_custom_call.1} parent=5 // pred_check
        %p139 = pneg %p138
      $region18: #{tpu_custom_call.1} parent=5 // pred_check_branch
        %141 = sbr.rel (%p139) target = $region20
      $region19: #{tpu_custom_call.1} parent=5 // pred_region
        // Predicated region
        $region21: #{tpu_custom_call.1} parent=19 // pred_check
          %p142 = pneg %p49
        $region22: #{tpu_custom_call.1} parent=19 // pred_check_branch
          %144 = sbr.rel (%p142) target = $region24
        $region23: #{tpu_custom_call.1} parent=19 // pred_region
          %s145 = sand.u32 %s39, 1
          %s146 = scalar_lea.sflag [#allocation3], %s145
          %s147 = sand.u32 %s39, 1
          %s148 = smul.addr %s147, 4
          %s149 = scalar_lea.vmem [#allocation2], %s148
          %151 = vsyncadd %s146, 0
          %s152 = sadd.s32 %s23, %s22
          %s153 = smul.addr %s152, 4
          %s154 = scalar_lea.hbm %s0, %s153
          %s156 = sshll.u32 %s154, 4
          %s157 = int_to_ptr.hbm [resolvable:$true] %s156
          %s158 = sshll.u32 %s149, 4
          %s159 = int_to_ptr.vmem [resolvable:$true] %s158
          %161 = dma.hbm_to_vmem [thread:$0]  %s157, 64, %s159, %s146
        $region24: #{tpu_custom_call.1} parent=19 // pred_fallthru
          _
      $region20: #{tpu_custom_call.1} parent=5 // pred_fallthru
        _
      %p162 = scmp.le.s32.totalorder 1, %s15
      %p163 = scmp.lt.s32.totalorder %s15, 3
      %p164 = pnand %p162, %p163
      %p165 = pneg %p164
      // Predicated region
      $region25: #{tpu_custom_call.1} parent=5 // pred_check
        _
      $region26: #{tpu_custom_call.1} parent=5 // pred_check_branch
        %167 = sbr.rel (%p164) target = $region28
      $region27: #{tpu_custom_call.1} parent=5 // pred_region
        %s168 = ssub.s32 %s15, 1
        %s169 = sand.u32 %s42, 1
        %s170 = scalar_lea.sflag [#allocation3], %s169
        %s171 = sand.u32 %s42, 1
        %s172 = smul.addr %s171, 4
        %s173 = scalar_lea.vmem [#allocation2], %s172
        // Predicated region
        $region29: #{tpu_custom_call.1} parent=27 // pred_check
          %p174 = pneg %p55
        $region30: #{tpu_custom_call.1} parent=27 // pred_check_branch
          %176 = sbr.rel (%p174) target = $region32
        $region31: #{tpu_custom_call.1} parent=27 // pred_region
          %178 = dma.done %s170, 64
        $region32: #{tpu_custom_call.1} parent=27 // pred_fallthru
          _
        // Predicated region
        $region33: #{tpu_custom_call.1} parent=27 // pred_check
          %p179 = pneg %p81
        $region34: #{tpu_custom_call.1} parent=27 // pred_check_branch
          %181 = sbr.rel (%p179) target = $region36
        $region35: #{tpu_custom_call.1} parent=27 // pred_region
          %183 = dma.done [#allocation6], 128
        $region36: #{tpu_custom_call.1} parent=27 // pred_fallthru
          _
        %s184 = sand.u32 %s42, 1
        %s185 = scalar_lea.sflag [#allocation3], %s184
        %s186 = sand.u32 %s42, 1
        %s187 = smul.addr %s186, 4
        %s188 = scalar_lea.vmem [#allocation2], %s187
        %p189 = pneg %p55
        %p190 = pneg %p52
        %p191 = pneg %p81
        %p192 = pneg %p78
        %p193 = pneg %p109
        %p194 = pneg %p106
        %s195 = sand.u32 %s96, 1
        %s196 = scalar_lea.sflag [#allocation4], %s195
        %s197 = sand.u32 %s96, 1
        %s198 = smul.addr %s197, 4
        %s199 = scalar_lea.vmem [#allocation7], %s198
        %v200 = vld [vmem:[%s173] sm:$0xf]
        %v201 = vunpack.c.l.bf16 %v200
        %v202 = vld [vmem:[#allocation5] sm:$0xff]
        %v203 = vadd.f32 %v201, %v202
        %v204 = vpack.c.bf16 %v203, %v203
        %vm205 = vcmask 257024
        %206 = vst.msk [vmem:[%s199] sm:$0xf] %vm205, %v204
        %s207 = sand.u32 %s96, 1
        %s208 = scalar_lea.sflag [#allocation4], %s207
        %s209 = sand.u32 %s96, 1
        %s210 = smul.addr %s209, 4
        %s211 = scalar_lea.vmem [#allocation7], %s210
        // Predicated region
        $region37: #{tpu_custom_call.1} parent=27 // pred_check
          %p212 = pneg %p106
        $region38: #{tpu_custom_call.1} parent=27 // pred_check_branch
          %214 = sbr.rel (%p212) target = $region40
        $region39: #{tpu_custom_call.1} parent=27 // pred_region
          %216 = vsyncadd %s208, 0
          %s217 = sadd.s32 %s25, %s24
          %s218 = smul.addr %s217, 4
          %s219 = scalar_lea.hbm %s2, %s218
          %s221 = sshll.u32 %s211, 4
          %s222 = int_to_ptr.vmem [resolvable:$true] %s221
          %s223 = sshll.u32 %s219, 4
          %s224 = int_to_ptr.hbm [resolvable:$true] %s223
          %226 = dma.vmem_to_hbm [thread:$0]  %s222, 64, %s224, %s208
        $region40: #{tpu_custom_call.1} parent=27 // pred_fallthru
          _
      $region28: #{tpu_custom_call.1} parent=5 // pred_fallthru
        _
      %p227 = scmp.le.s32.totalorder 2, %s15
      // Predicated region
      $region41: #{tpu_custom_call.1} parent=5 // pred_check
        %p228 = pneg %p227
      $region42: #{tpu_custom_call.1} parent=5 // pred_check_branch
        %230 = sbr.rel (%p228) target = $region44
      $region43: #{tpu_custom_call.1} parent=5 // pred_region
        %s231 = ssub.s32 %s15, 2
        // Predicated region
        $region45: #{tpu_custom_call.1} parent=43 // pred_check
          %p232 = pneg %p112
        $region46: #{tpu_custom_call.1} parent=43 // pred_check_branch
          %234 = sbr.rel (%p232) target = $region48
        $region47: #{tpu_custom_call.1} parent=43 // pred_region
          %s235 = sand.u32 %s97, 1
          %s236 = scalar_lea.sflag [#allocation4], %s235
          %s237 = sand.u32 %s97, 1
          %s238 = smul.addr %s237, 4
          %s239 = scalar_lea.vmem [#allocation7], %s238
          %241 = dma.done %s236, 64
        $region48: #{tpu_custom_call.1} parent=43 // pred_fallthru
          _
      $region44: #{tpu_custom_call.1} parent=5 // pred_fallthru
        _
    $region6: #{tpu_custom_call.1} parent=1 // loop_footer
      %s19 = sadd.s32 1, %s15
    $region7: #{tpu_custom_call.1} parent=1 // loop_footer_branch
      %14 = sbr.rel target = $region3
    $region8: #{tpu_custom_call.1} parent=1 // loop_exit
      _
    %242 = vsyncpa [#allocation3], 1
    %s243 = scalar_lea.sflag [#allocation3], 1
    %244 = vsyncpa %s243, 1
    %245 = vsyncpa [#allocation6], 1
    %246 = vsyncpa [#allocation4], 1
    %s247 = scalar_lea.sflag [#allocation4], 1
    %248 = vsyncpa %s247, 1

</llo_original>
